<compile_context>
chip_gen: v6e
topology: v6e:2x2x1
jax: 0.10.0
libtpu: 0.0.40
codegen_flags: <defaults>
</compile_context>

<pallas_src>
import numpy as np
import jax
import jax.numpy as jnp
from jax import lax
from jax.experimental import pallas as pl
from jax.experimental.pallas import tpu as pltpu

NP_PILOTS = 48.0                       # torch.tensor([48.0]) in the reference forward
INV_NP = 1.0 / NP_PILOTS
INV_SQRT_NP = 1.0 / float(np.sqrt(NP_PILOTS))


# ---------------------------------------------------------------------------
# Deterministic parameter construction (mirrors DFT_matrixes + theta init).
# ---------------------------------------------------------------------------
def dft_matrices(freq_samples: int, time_samples: int):
    f = np.arange(freq_samples, dtype=np.float64)[:, None]
    t = np.arange(time_samples, dtype=np.float64)[None, :]
    ang = -2.0 * np.pi * f * t / float(time_samples)
    scale = 1.0 / np.sqrt(float(time_samples))
    return (np.cos(ang) * scale).astype(np.float32), (np.sin(ang) * scale).astype(np.float32)


# ---------------------------------------------------------------------------
# Shrinkage activation (pure-JAX reference version).
# TODO(synk): ch_est_net.activation.<act_class> source is not provided; we use
# the standard 3-parameter "exponential" LAMP shrinkage (Borgerding & Schniter)
#   eta(r)  = th0*r + th2*r*exp(-r^2 / (2*(th1*sigma)^2))
#   eta'(r) = th0 + th2*exp(-r^2/(2*(th1*sigma)^2)) * (1 - r^2/(th1*sigma)^2)
# which matches the theta=[1, 1, -1] init and the .function/.derivative API.
# ---------------------------------------------------------------------------
def _shrink(R, sigma, t0, t1, t2):
    s2 = (t1 * sigma) ** 2 + 1e-12
    g = jnp.exp(-(R * R) / (2.0 * s2))
    return t0 * R + t2 * R * g


def _shrink_deriv(R, sigma, t0, t1, t2):
    s2 = (t1 * sigma) ** 2 + 1e-12
    g = jnp.exp(-(R * R) / (2.0 * s2))
    return t0 + t2 * g * (1.0 - (R * R) / s2)


# ---------------------------------------------------------------------------
# Block-weight construction (done once at trace time in the wrapper).
#   W1 = [[A_re^T, A_im^T], [-A_im^T, A_re^T]]  : (2T, 2F)
#   W2 = [[A_re,   A_im  ], [-A_im,   A_re  ]]  : (2F, 2T)
# Cast to bf16 for native-rate MXU pushes (accumulation stays f32).
# ---------------------------------------------------------------------------
def make_block_weights(A_re, A_im):
    W1 = jnp.concatenate(
        [jnp.concatenate([A_re.T, A_im.T], axis=1),
         jnp.concatenate([-A_im.T, A_re.T], axis=1)], axis=0)
    W2 = jnp.concatenate(
        [jnp.concatenate([A_re, A_im], axis=1),
         jnp.concatenate([-A_im, A_re], axis=1)], axis=0)
    return W1.astype(jnp.bfloat16), W2.astype(jnp.bfloat16)


# ---------------------------------------------------------------------------
# Pallas kernel: one full LAMP layer iteration, packed re|im along lanes.
# ---------------------------------------------------------------------------
def lamp_kernel(theta_ref,               # SMEM (3,)
                u_ref,                   # VMEM (B, 2T)   [u_re | u_im]
                z_ref,                   # VMEM (B, 2T)   [z_re | z_im]
                Hh_ref,                  # VMEM (B, 2F)   [H_re | H_im]
                W1_ref,                  # VMEM (2T, 2F)  bf16
                W2_ref,                  # VMEM (2F, 2T)  bf16
                z_out,                   # VMEM (B, 2T)
                H_out):                  # VMEM (B, 2F)
    t0 = theta_ref[0]
    t1 = theta_ref[1]
    t2 = theta_ref[2]

    z = z_ref[...]                       # f32, used for elementwise math
    u = u_ref[...]
    T = z.shape[1] // 2
    F = Hh_ref.shape[1] // 2

    # --- matmul 1: [Z_re|Z_im] = [z_re|z_im] @ W1  (bf16 operands, f32 acc) ---
    Z = jnp.dot(z.astype(jnp.bfloat16), W1_ref[...],
                preferred_element_type=jnp.float32)          # (B, 2F)
    R = Hh_ref[...] + Z

    # --- sigma = ||z||_F / sqrt(Np), single global reduce (packed tile) ---
    sq = jnp.sum(z * z, keepdims=True)                       # (1, 1)
    sigma = jnp.sqrt(sq) * INV_SQRT_NP

    s2 = (t1 * sigma) ** 2 + 1e-12
    inv_s2 = pl.reciprocal(s2, approx=True)                  # scalar recip on EUP

    # --- fused shrinkage: one R*R and one exp shared by eta and eta' ---
    R2 = R * R
    u_arg = R2 * inv_s2
    g = jnp.exp(-0.5 * u_arg)
    H_new = t0 * R + t2 * (R * g)                            # eta(R)
    dH = t0 + t2 * g * (1.0 - u_arg)                         # eta'(R)

    # --- Onsager scalars: sum eta' over re-half / im-half of the lane axis ---
    laneF = lax.broadcasted_iota(jnp.int32, dH.shape, 1)
    re_mask = laneF < F
    b_re = jnp.sum(jnp.where(re_mask, dH, 0.0), keepdims=True) * INV_NP
    b_im = jnp.sum(jnp.where(re_mask, 0.0, dH), keepdims=True) * INV_NP

    # --- matmul 2: [h_re|h_im] = [H_re|H_im] @ W2 ---
    h = jnp.dot(H_new.astype(jnp.bfloat16), W2_ref[...],
                preferred_element_type=jnp.float32)          # (B, 2T)

    laneT = lax.broadcasted_iota(jnp.int32, z.shape, 1)
    b_vec = jnp.where(laneT < T, b_re, b_im)                 # (B, 2T)

    z_out[...] = u - h + b_vec * z
    H_out[...] = H_new


# ---------------------------------------------------------------------------
# Wrapper: pack re/im along lanes, build block weights, one pallas_call.
# ---------------------------------------------------------------------------
@jax.jit
def lamp_layer(theta, u_re, u_im, z_re, z_im, H_hat_re, H_hat_im, A_re, A_im):
    B, T = z_re.shape
    F = H_hat_re.shape[1]

    W1, W2 = make_block_weights(A_re, A_im)
    u_pack = jnp.concatenate([u_re, u_im], axis=1)           # (B, 2T)
    z_pack = jnp.concatenate([z_re, z_im], axis=1)           # (B, 2T)
    H_pack = jnp.concatenate([H_hat_re, H_hat_im], axis=1)   # (B, 2F)

    vmem = pl.BlockSpec(memory_space=pltpu.MemorySpace.VMEM)
    smem = pl.BlockSpec(memory_space=pltpu.MemorySpace.SMEM)

    z_out, H_out = pl.pallas_call(
        lamp_kernel,
        out_shape=(jax.ShapeDtypeStruct((B, 2 * T), jnp.float32),
                   jax.ShapeDtypeStruct((B, 2 * F), jnp.float32)),
        in_specs=[smem, vmem, vmem, vmem, vmem, vmem],
        out_specs=(vmem, vmem),
    )(theta, u_pack, z_pack, H_pack, W1, W2)

    return (z_out[:, :T], z_out[:, T:], H_out[:, :F], H_out[:, F:])


# ---------------------------------------------------------------------------
# Pure-JAX f32 reference (same math as the PyTorch forward) for a sanity check.
# ---------------------------------------------------------------------------
def lamp_layer_ref(theta, u_re, u_im, z_re, z_im, H_hat_re, H_hat_im, A_re, A_im):
    t0, t1, t2 = theta[0], theta[1], theta[2]
    Z_re = z_re @ A_re.T - z_im @ A_im.T
    Z_im = z_re @ A_im.T + z_im @ A_re.T
    R_re = H_hat_re + Z_re
    R_im = H_hat_im + Z_im
    sigma = jnp.sqrt(jnp.sum(z_re ** 2) + jnp.sum(z_im ** 2)) / jnp.sqrt(NP_PILOTS)
    H_re_new = _shrink(R_re, sigma, t0, t1, t2)
    H_im_new = _shrink(R_im, sigma, t0, t1, t2)
    b_re = jnp.sum(_shrink_deriv(R_re, sigma, t0, t1, t2)) / NP_PILOTS
    b_im = jnp.sum(_shrink_deriv(R_im, sigma, t0, t1, t2)) / NP_PILOTS
    h_re = H_re_new @ A_re - H_im_new @ A_im
    h_im = H_re_new @ A_im + H_im_new @ A_re
    return (u_re - h_re + b_re * z_re,
            u_im - h_im + b_im * z_im,
            H_re_new, H_im_new)


if __name__ == "__main__":
    B, F, T = 8, 64, 128  # batch, freq_samples, time_samples

    # parameters (deterministic, as in __init__)
    DFT_re, DFT_im = dft_matrices(F, T)
    A_re = jnp.asarray(DFT_re)
    A_im = jnp.asarray(DFT_im)
    theta = jnp.asarray([1.0, 1.0, -1.0], dtype=jnp.float32)

    # deterministic example inputs
    key = jax.random.PRNGKey(0)
    ks = jax.random.split(key, 6)
    u_re = jax.random.normal(ks[0], (B, T), dtype=jnp.float32)
    u_im = jax.random.normal(ks[1], (B, T), dtype=jnp.float32)
    z_re = jax.random.normal(ks[2], (B, T), dtype=jnp.float32)
    z_im = jax.random.normal(ks[3], (B, T), dtype=jnp.float32)
    H_hat_re = jax.random.normal(ks[4], (B, F), dtype=jnp.float32)
    H_hat_im = jax.random.normal(ks[5], (B, F), dtype=jnp.float32)

    out = lamp_layer(theta, u_re, u_im, z_re, z_im, H_hat_re, H_hat_im, A_re, A_im)
    out = jax.block_until_ready(out)

    ref = lamp_layer_ref(theta, u_re, u_im, z_re, z_im, H_hat_re, H_hat_im, A_re, A_im)
    for o, r in zip(out, ref):
        np.testing.assert_allclose(np.asarray(o), np.asarray(r), rtol=2e-2, atol=2e-2)

    print("KERNEL_OK")
</pallas_src>

<mosaic_0001>
module attributes {stable_mosaic.version = 11 : i64} {
  func.func @lamp_kernel(%arg0: memref<3xf32, #tpu.memory_space<smem>>, %arg1: memref<8x256xf32, #tpu.memory_space<vmem>>, %arg2: memref<8x256xf32, #tpu.memory_space<vmem>>, %arg3: memref<8x128xf32, #tpu.memory_space<vmem>>, %arg4: memref<256x128xbf16, #tpu.memory_space<vmem>>, %arg5: memref<128x256xbf16, #tpu.memory_space<vmem>>, %arg6: memref<8x256xf32, #tpu.memory_space<vmem>>, %arg7: memref<8x128xf32, #tpu.memory_space<vmem>>) attributes {dimension_semantics = [], scalar_prefetch = 0 : i64, scratch_operands = 0 : i64, tpu.core_type = #tpu.core_type<tc>} {
    %c0 = arith.constant 0 : index
    %0 = memref.load %arg0[%c0] : memref<3xf32, #tpu.memory_space<smem>>
    %c1 = arith.constant 1 : index
    %1 = memref.load %arg0[%c1] : memref<3xf32, #tpu.memory_space<smem>>
    %c2 = arith.constant 2 : index
    %2 = memref.load %arg0[%c2] : memref<3xf32, #tpu.memory_space<smem>>
    %c0_0 = arith.constant 0 : index
    %c0_1 = arith.constant 0 : index
    %3 = vector.load %arg2[%c0_0, %c0_1] : memref<8x256xf32, #tpu.memory_space<vmem>>, vector<8x256xf32>
    %c0_2 = arith.constant 0 : index
    %c0_3 = arith.constant 0 : index
    %4 = vector.load %arg1[%c0_2, %c0_3] : memref<8x256xf32, #tpu.memory_space<vmem>>, vector<8x256xf32>
    %5 = arith.truncf %3 : vector<8x256xf32> to vector<8x256xbf16>
    %c0_4 = arith.constant 0 : index
    %c0_5 = arith.constant 0 : index
    %6 = vector.load %arg4[%c0_4, %c0_5] : memref<256x128xbf16, #tpu.memory_space<vmem>>, vector<256x128xbf16>
    %cst = arith.constant dense<0.000000e+00> : vector<8x128xf32>
    %7 = tpu.matmul %5, %6, %cst {dimension_numbers = #tpu.dot_dimension_numbers<[1], [0], [0], [1], [0, 0, 1, 1], [], []>} : vector<8x256xbf16>, vector<256x128xbf16>, vector<8x128xf32> -> vector<8x128xf32>
    %c0_6 = arith.constant 0 : index
    %c0_7 = arith.constant 0 : index
    %8 = vector.load %arg3[%c0_6, %c0_7] : memref<8x128xf32, #tpu.memory_space<vmem>>, vector<8x128xf32>
    %9 = arith.addf %8, %7 : vector<8x128xf32>
    %10 = arith.mulf %3, %3 : vector<8x256xf32>
    %11 = vector.shape_cast %10 : vector<8x256xf32> to vector<1x8x256xf32>
    %cst_8 = arith.constant dense<0.000000e+00> : vector<1xf32>
    %12 = vector.multi_reduction <add>, %11, %cst_8 [1, 2] : vector<1x8x256xf32> to vector<1xf32>
    %13 = vector.shape_cast %12 : vector<1xf32> to vector<1x1x1xf32>
    %14 = vector.extract %13[0, 0, 0] : f32 from vector<1x1x1xf32>
    %15 = vector.broadcast %14 : f32 to vector<1x1xf32>
    %16 = math.sqrt %15 : vector<1x1xf32>
    %cst_9 = arith.constant 0.144337565 : f32
    %17 = vector.broadcast %cst_9 : f32 to vector<1x1xf32>
    %18 = arith.mulf %16, %17 : vector<1x1xf32>
    %19 = vector.broadcast %1 : f32 to vector<1x1xf32>
    %20 = arith.mulf %19, %18 : vector<1x1xf32>
    %21 = arith.mulf %20, %20 : vector<1x1xf32>
    %cst_10 = arith.constant 9.99999996E-13 : f32
    %22 = vector.broadcast %cst_10 : f32 to vector<1x1xf32>
    %23 = arith.addf %21, %22 : vector<1x1xf32>
    %24 = tpu.reciprocal %23 {approx = true} : vector<1x1xf32> -> vector<1x1xf32>
    %25 = arith.mulf %9, %9 : vector<8x128xf32>
    %26 = vector.broadcast %24 : vector<1x1xf32> to vector<8x128xf32>
    %27 = arith.mulf %25, %26 : vector<8x128xf32>
    %cst_11 = arith.constant -5.000000e-01 : f32
    %28 = vector.broadcast %cst_11 : f32 to vector<8x128xf32>
    %29 = arith.mulf %28, %27 : vector<8x128xf32>
    %30 = math.exp %29 : vector<8x128xf32>
    %31 = vector.broadcast %0 : f32 to vector<8x128xf32>
    %32 = arith.mulf %31, %9 : vector<8x128xf32>
    %33 = arith.mulf %9, %30 : vector<8x128xf32>
    %34 = vector.broadcast %2 : f32 to vector<8x128xf32>
    %35 = arith.mulf %34, %33 : vector<8x128xf32>
    %36 = arith.addf %32, %35 : vector<8x128xf32>
    %37 = vector.broadcast %2 : f32 to vector<8x128xf32>
    %38 = arith.mulf %37, %30 : vector<8x128xf32>
    %cst_12 = arith.constant 1.000000e+00 : f32
    %39 = vector.broadcast %cst_12 : f32 to vector<8x128xf32>
    %40 = arith.subf %39, %27 : vector<8x128xf32>
    %41 = arith.mulf %38, %40 : vector<8x128xf32>
    %42 = vector.broadcast %0 : f32 to vector<8x128xf32>
    %43 = arith.addf %42, %41 : vector<8x128xf32>
    %44 = tpu.iota {dimensions = array<i32: 1>} : vector<8x128xi32>
    %c64_i32 = arith.constant 64 : i32
    %45 = vector.broadcast %c64_i32 : i32 to vector<8x128xi32>
    %46 = arith.cmpi slt, %44, %45 : vector<8x128xi32>
    %cst_13 = arith.constant 0.000000e+00 : f32
    %47 = vector.broadcast %cst_13 : f32 to vector<8x128xf32>
    %48 = arith.select %46, %43, %47 : vector<8x128xi1>, vector<8x128xf32>
    %49 = vector.shape_cast %48 : vector<8x128xf32> to vector<1x8x128xf32>
    %cst_14 = arith.constant dense<0.000000e+00> : vector<1xf32>
    %50 = vector.multi_reduction <add>, %49, %cst_14 [1, 2] : vector<1x8x128xf32> to vector<1xf32>
    %51 = vector.shape_cast %50 : vector<1xf32> to vector<1x1x1xf32>
    %52 = vector.extract %51[0, 0, 0] : f32 from vector<1x1x1xf32>
    %53 = vector.broadcast %52 : f32 to vector<1x1xf32>
    %cst_15 = arith.constant 0.020833334 : f32
    %54 = vector.broadcast %cst_15 : f32 to vector<1x1xf32>
    %55 = arith.mulf %53, %54 : vector<1x1xf32>
    %cst_16 = arith.constant 0.000000e+00 : f32
    %56 = vector.broadcast %cst_16 : f32 to vector<8x128xf32>
    %57 = arith.select %46, %56, %43 : vector<8x128xi1>, vector<8x128xf32>
    %58 = vector.shape_cast %57 : vector<8x128xf32> to vector<1x8x128xf32>
    %cst_17 = arith.constant dense<0.000000e+00> : vector<1xf32>
    %59 = vector.multi_reduction <add>, %58, %cst_17 [1, 2] : vector<1x8x128xf32> to vector<1xf32>
    %60 = vector.shape_cast %59 : vector<1xf32> to vector<1x1x1xf32>
    %61 = vector.extract %60[0, 0, 0] : f32 from vector<1x1x1xf32>
    %62 = vector.broadcast %61 : f32 to vector<1x1xf32>
    %cst_18 = arith.constant 0.020833334 : f32
    %63 = vector.broadcast %cst_18 : f32 to vector<1x1xf32>
    %64 = arith.mulf %62, %63 : vector<1x1xf32>
    %65 = arith.truncf %36 : vector<8x128xf32> to vector<8x128xbf16>
    %c0_19 = arith.constant 0 : index
    %c0_20 = arith.constant 0 : index
    %66 = vector.load %arg5[%c0_19, %c0_20] : memref<128x256xbf16, #tpu.memory_space<vmem>>, vector<128x256xbf16>
    %cst_21 = arith.constant dense<0.000000e+00> : vector<8x256xf32>
    %67 = tpu.matmul %65, %66, %cst_21 {dimension_numbers = #tpu.dot_dimension_numbers<[1], [0], [0], [1], [0, 0, 1, 1], [], []>} : vector<8x128xbf16>, vector<128x256xbf16>, vector<8x256xf32> -> vector<8x256xf32>
    %68 = tpu.iota {dimensions = array<i32: 1>} : vector<8x256xi32>
    %c128_i32 = arith.constant 128 : i32
    %69 = vector.broadcast %c128_i32 : i32 to vector<8x256xi32>
    %70 = arith.cmpi slt, %68, %69 : vector<8x256xi32>
    %71 = vector.shape_cast %55 : vector<1x1xf32> to vector<1x1xf32>
    %72 = vector.broadcast %71 : vector<1x1xf32> to vector<8x256xf32>
    %73 = vector.shape_cast %64 : vector<1x1xf32> to vector<1x1xf32>
    %74 = vector.broadcast %73 : vector<1x1xf32> to vector<8x256xf32>
    %75 = arith.select %70, %72, %74 : vector<8x256xi1>, vector<8x256xf32>
    %76 = arith.subf %4, %67 : vector<8x256xf32>
    %77 = arith.mulf %75, %3 : vector<8x256xf32>
    %78 = arith.addf %76, %77 : vector<8x256xf32>
    %c0_22 = arith.constant 0 : index
    %c0_23 = arith.constant 0 : index
    %79 = vector.load %arg6[%c0_22, %c0_23] : memref<8x256xf32, #tpu.memory_space<vmem>>, vector<8x256xf32>
    tpu.vector_store %arg6[%c0_22, %c0_23], %78 {strides = array<i32>} : memref<8x256xf32, #tpu.memory_space<vmem>>, vector<8x256xf32>,
    %c0_24 = arith.constant 0 : index
    %c0_25 = arith.constant 0 : index
    %80 = vector.load %arg7[%c0_24, %c0_25] : memref<8x128xf32, #tpu.memory_space<vmem>>, vector<8x128xf32>
    tpu.vector_store %arg7[%c0_24, %c0_25], %36 {strides = array<i32>} : memref<8x128xf32, #tpu.memory_space<vmem>>, vector<8x128xf32>,
    return
  }
}

</mosaic_0001>

<llo_original>
// kernel: lamp_layer.1
$region0: #{lamp_layer.1}
  #allocation0 [shape = 'u32[]', space=smem, size = 0x4, offset = 0x4, fixed_abs, tag = 'smem constant byte address 0x4 - core index']
  #allocation1 [shape = 'u32[144,128]{1,0:T(1,128)}', space=vmem, size = 0x12000, scoped, tag = 'internal scratch']
  %s0 = inlined_call_operand.vmem [shape: f32[3], index: 0, kind: input, shape index: {}]
  %s1 = inlined_call_operand.vmem [shape: f32[8,256], index: 1, kind: input, shape index: {}]
  %s2 = inlined_call_operand.vmem [shape: f32[8,256], index: 2, kind: input, shape index: {}]
  %s3 = inlined_call_operand.vmem [shape: f32[8,128], index: 3, kind: input, shape index: {}]
  %s4 = inlined_call_operand.vmem [shape: bf16[256,128], index: 4, kind: input, shape index: {}]
  %s5 = inlined_call_operand.vmem [shape: bf16[128,256], index: 5, kind: input, shape index: {}]
  %s6 = inlined_call_operand.vmem [shape: f32[8,256], index: 6, kind: output, shape index: {0}]
  %s7 = inlined_call_operand.vmem [shape: f32[8,128], index: 7, kind: output, shape index: {1}]
  %8 = xla_tuple %s6, %s7
  %s9 = sld [smem:[#allocation0]]
  $region46: #{lamp_layer.1} parent=0
    _
  %s11 = ssub.s32 1, %s9
  %s12 = scalar_select 0, %s11, %s9
  $region1: #{lamp_layer.1} parent=0
    #allocation2 [shape = 'u8[512]{0}', space=smem, size = 0x200, scoped, tag = 'input window, operand 0, single buffered']
    #allocation3 [shape = 's32[1]{0}', space=sflag, size = 0x4, scoped, tag = 'scoped memory for lamp_layer.1']
    %13 = vsyncpa [#allocation3], 0
    // Predicated region
    $region2: #{lamp_layer.1} parent=1 // pred_check
      _
    $region3: #{lamp_layer.1} parent=1 // pred_check_branch
      %15 = sbr.rel (0) target = $region5
    $region4: #{lamp_layer.1} parent=1 // pred_region
      %s17 = ssub.s32 16, 16
      %18 = vsyncadd [#allocation3], %s17
      %s20 = sshll.u32 %s0, 4
      %s21 = int_to_ptr.vmem [resolvable:$true] %s20
      %23 = dma.vmem_to_smem %s21, 16, [#allocation2], [#allocation3]
    $region5: #{lamp_layer.1} parent=1 // pred_fallthru
      _
    // Predicated region
    $region6: #{lamp_layer.1} parent=1 // pred_check
      _
    $region7: #{lamp_layer.1} parent=1 // pred_check_branch
      %25 = sbr.rel (0) target = $region9
    $region8: #{lamp_layer.1} parent=1 // pred_region
      _
    $region9: #{lamp_layer.1} parent=1 // pred_fallthru
      _
    // Predicated region
    $region10: #{lamp_layer.1} parent=1 // pred_check
      _
    $region11: #{lamp_layer.1} parent=1 // pred_check_branch
      %27 = sbr.rel (0) target = $region13
    $region12: #{lamp_layer.1} parent=1 // pred_region
      _
    $region13: #{lamp_layer.1} parent=1 // pred_fallthru
      _
    // Predicated region
    $region14: #{lamp_layer.1} parent=1 // pred_check
      _
    $region15: #{lamp_layer.1} parent=1 // pred_check_branch
      %29 = sbr.rel (0) target = $region17
    $region16: #{lamp_layer.1} parent=1 // pred_region
      _
    $region17: #{lamp_layer.1} parent=1 // pred_fallthru
      _
    // Predicated region
    $region18: #{lamp_layer.1} parent=1 // pred_check
      _
    $region19: #{lamp_layer.1} parent=1 // pred_check_branch
      %31 = sbr.rel (0) target = $region21
    $region20: #{lamp_layer.1} parent=1 // pred_region
      _
    $region21: #{lamp_layer.1} parent=1 // pred_fallthru
      _
    // Predicated region
    $region22: #{lamp_layer.1} parent=1 // pred_check
      _
    $region23: #{lamp_layer.1} parent=1 // pred_check_branch
      %33 = sbr.rel (0) target = $region25
    $region24: #{lamp_layer.1} parent=1 // pred_region
      _
    $region25: #{lamp_layer.1} parent=1 // pred_fallthru
      _
    // Predicated region
    $region26: #{lamp_layer.1} parent=1 // pred_check
      _
    $region27: #{lamp_layer.1} parent=1 // pred_check_branch
      %35 = sbr.rel (0) target = $region29
    $region28: #{lamp_layer.1} parent=1 // pred_region
      %36 = dma.done [#allocation3], 16
    $region29: #{lamp_layer.1} parent=1 // pred_fallthru
      _
    %37 = sfence
    %s39 = sld [smem:[#allocation2]]
    %s40 = sld [smem:[#allocation2 + $0x1]]
    %s41 = sld [smem:[#allocation2 + $0x2]]
    %v42 = vld [vmem:[%s2] sm:$0xff]
    %v43 = vld [vmem:[%s2 + $0x8] sm:$0xff]
    %v44 = vld [vmem:[%s1] sm:$0xff]
    %v45 = vld [vmem:[%s1 + $0x8] sm:$0xff]
    %v46 = vpack.c.bf16 %v42, %v42
    %v47 = vpack.c.bf16 %v43, %v43
    %v48 = vld [vmem:[%s4] sm:$0xf]
    %v49 = vld [vmem:[%s4 + $0x4] sm:$0xf]
    %v50 = vld [vmem:[%s4 + $0x8] sm:$0xf]
    %v51 = vld [vmem:[%s4 + $0xc] sm:$0xf]
    %v52 = vld [vmem:[%s4 + $0x10] sm:$0xf]
    %v53 = vld [vmem:[%s4 + $0x14] sm:$0xf]
    %v54 = vld [vmem:[%s4 + $0x18] sm:$0xf]
    %v55 = vld [vmem:[%s4 + $0x1c] sm:$0xf]
    %v56 = vld [vmem:[%s4 + $0x20] sm:$0xf]
    %v57 = vld [vmem:[%s4 + $0x24] sm:$0xf]
    %v58 = vld [vmem:[%s4 + $0x28] sm:$0xf]
    %v59 = vld [vmem:[%s4 + $0x2c] sm:$0xf]
    %v60 = vld [vmem:[%s4 + $0x30] sm:$0xf]
    %v61 = vld [vmem:[%s4 + $0x34] sm:$0xf]
    %v62 = vld [vmem:[%s4 + $0x38] sm:$0xf]
    %v63 = vld [vmem:[%s4 + $0x3c] sm:$0xf]
    %v64 = vld [vmem:[%s4 + $0x40] sm:$0xf]
    %v65 = vld [vmem:[%s4 + $0x44] sm:$0xf]
    %v66 = vld [vmem:[%s4 + $0x48] sm:$0xf]
    %v67 = vld [vmem:[%s4 + $0x4c] sm:$0xf]
    %v68 = vld [vmem:[%s4 + $0x50] sm:$0xf]
    %v69 = vld [vmem:[%s4 + $0x54] sm:$0xf]
    %v70 = vld [vmem:[%s4 + $0x58] sm:$0xf]
    %v71 = vld [vmem:[%s4 + $0x5c] sm:$0xf]
    %v72 = vld [vmem:[%s4 + $0x60] sm:$0xf]
    %v73 = vld [vmem:[%s4 + $0x64] sm:$0xf]
    %v74 = vld [vmem:[%s4 + $0x68] sm:$0xf]
    %v75 = vld [vmem:[%s4 + $0x6c] sm:$0xf]
    %v76 = vld [vmem:[%s4 + $0x70] sm:$0xf]
    %v77 = vld [vmem:[%s4 + $0x74] sm:$0xf]
    %v78 = vld [vmem:[%s4 + $0x78] sm:$0xf]
    %v79 = vld [vmem:[%s4 + $0x7c] sm:$0xf]
    %v112 = vunpack.c.l.b16 %v48
    %v113 = vunpack.c.l.b16 %v49
    %v114 = vunpack.c.l.b16 %v50
    %v115 = vunpack.c.l.b16 %v51
    %v116 = vunpack.c.l.b16 %v52
    %v117 = vunpack.c.l.b16 %v53
    %v118 = vunpack.c.l.b16 %v54
    %v119 = vunpack.c.l.b16 %v55
    %v120 = vunpack.c.l.b16 %v56
    %v121 = vunpack.c.l.b16 %v57
    %v122 = vunpack.c.l.b16 %v58
    %v123 = vunpack.c.l.b16 %v59
    %v124 = vunpack.c.l.b16 %v60
    %v125 = vunpack.c.l.b16 %v61
    %v126 = vunpack.c.l.b16 %v62
    %v127 = vunpack.c.l.b16 %v63
    %v128 = vunpack.c.l.b16 %v64
    %v129 = vunpack.c.l.b16 %v65
    %v130 = vunpack.c.l.b16 %v66
    %v131 = vunpack.c.l.b16 %v67
    %v132 = vunpack.c.l.b16 %v68
    %v133 = vunpack.c.l.b16 %v69
    %v134 = vunpack.c.l.b16 %v70
    %v135 = vunpack.c.l.b16 %v71
    %v136 = vunpack.c.l.b16 %v72
    %v137 = vunpack.c.l.b16 %v73
    %v138 = vunpack.c.l.b16 %v74
    %v139 = vunpack.c.l.b16 %v75
    %v140 = vunpack.c.l.b16 %v76
    %v141 = vunpack.c.l.b16 %v77
    %v142 = vunpack.c.l.b16 %v78
    %v143 = vunpack.c.l.b16 %v79
    %v144 = vpack.c.b16 %v113, %v112
    %v145 = vpack.c.b16 %v115, %v114
    %v146 = vpack.c.b16 %v117, %v116
    %v147 = vpack.c.b16 %v119, %v118
    %v148 = vpack.c.b16 %v121, %v120
    %v149 = vpack.c.b16 %v123, %v122
    %v150 = vpack.c.b16 %v125, %v124
    %v151 = vpack.c.b16 %v127, %v126
    %v152 = vpack.c.b16 %v129, %v128
    %v153 = vpack.c.b16 %v131, %v130
    %v154 = vpack.c.b16 %v133, %v132
    %v155 = vpack.c.b16 %v135, %v134
    %v156 = vpack.c.b16 %v137, %v136
    %v157 = vpack.c.b16 %v139, %v138
    %v158 = vpack.c.b16 %v141, %v140
    %v159 = vpack.c.b16 %v143, %v142
    %176 = vmatprep.subr.bf16.mxu0 0
    %177 = vmatpush1.bf16.msra.mxu0 %v151
    %178 = vmatprep.subr.bf16.mxu0 0
    %179 = vmatpush1.bf16.msra.mxu0 %v150
    %180 = vmatprep.subr.bf16.mxu0 0
    %181 = vmatpush1.bf16.msra.mxu0 %v149
    %182 = vmatprep.subr.bf16.mxu0 0
    %183 = vmatpush1.bf16.msra.mxu0 %v148
    %184 = vmatprep.subr.bf16.mxu0 0
    %185 = vmatpush1.bf16.msra.mxu0 %v147
    %186 = vmatprep.subr.bf16.mxu0 0
    %187 = vmatpush1.bf16.msra.mxu0 %v146
    %188 = vmatprep.subr.bf16.mxu0 0
    %189 = vmatpush1.bf16.msra.mxu0 %v145
    %190 = vmatprep.subr.bf16.mxu0 0
    %191 = vmatpush1.bf16.msra.mxu0 %v144
    %192 = vmatprep.subr.bf16.mxu0 0
    %193 = vmatpush2.bf16.msra.mxu0 %v159
    %194 = vmatprep.subr.bf16.mxu0 0
    %195 = vmatpush2.bf16.msra.mxu0 %v158
    %196 = vmatprep.subr.bf16.mxu0 0
    %197 = vmatpush2.bf16.msra.mxu0 %v157
    %198 = vmatprep.subr.bf16.mxu0 0
    %199 = vmatpush2.bf16.msra.mxu0 %v156
    %200 = vmatprep.subr.bf16.mxu0 0
    %201 = vmatpush2.bf16.msra.mxu0 %v155
    %202 = vmatprep.subr.bf16.mxu0 0
    %203 = vmatpush2.bf16.msra.mxu0 %v154
    %204 = vmatprep.subr.bf16.mxu0 0
    %205 = vmatpush2.bf16.msra.mxu0 %v153
    %206 = vmatprep.subr.bf16.mxu0 0
    %207 = vmatpush2.bf16.msra.mxu0 %v152
    %208 = vmatprep.mubr.bf16.mxu0 %v47
    %209 = vmatmul.mubr.bf16.gmra.mxu0 %v46
    %v210 = vpop.f32.mrf.mxu0
    %v211 = vadd.f32 0.0, %v210
    %v212 = vpop.f32.mrf.mxu0
    %v213 = vpop.f32.mrf.mxu0
    %v214 = vpop.f32.mrf.mxu0
    %215 = vdwg.mxu0
    %v216 = vld [vmem:[%s3] sm:$0xff]
    %v217 = vadd.f32 %v216, %v211
    %v218 = vmul.f32 %v42, %v42
    %v219 = vmul.f32 %v43, %v43
    %v220 = vadd.f32 %v218, %v219
    %221 = vadd.xlane.f32.xlu0 %v220
    %v222 = vpop.xlane.xlu0 %221
    %v223 = vrot.slane %v222, 4
    %v224 = vadd.f32 %v222, %v223
    %v225 = vrot.slane %v224, 2
    %v226 = vadd.f32 %v224, %v225
    %v227 = vrot.slane %v226, 1
    %v228 = vadd.f32 %v226, %v227
    %s229 = vtos %v228
    %v230 = vstv %s229
    %v231 = vrsqrt.pop %v230
    %v232 = vmul.f32 %v230, %v231
    %vm233 = vcmp.eq.f32.partialorder %v230, inf
    %v234 = vsel %vm233, %v230, %v232
    %vm235 = vcmp.eq.f32.partialorder %v230, 0.0
    %v236 = vand.u32 %v230, 2147483648
    %v237 = vsel %vm235, %v236, %v234
    %v238 = vmul.f32 %v237, 0.14433756
    %v239 = vstv %s40
    %v240 = vmul.f32 %v239, %v238
    %v241 = vmul.f32 %v240, %v240
    %v242 = vadd.f32 %v241, 1e-12
    %v243 = vrcp.pop %v242
    %v244 = vmul.f32 %v217, %v217
    %v245 = vmul.f32 %v244, %v243
    %v246 = vmul.f32 %v245, -0.5
    %v247 = vmul.f32 %v246, 1.442695
    %v248 = vpow.pop %v247
    %v249 = vstv %s39
    %v250 = vmul.f32 %v249, %v217
    %v251 = vmul.f32 %v217, %v248
    %v252 = vstv %s41
    %v253 = vmul.f32 %v252, %v251
    %v254 = vadd.f32 %v250, %v253
    %v255 = vmul.f32 %v252, %v248
    %v256 = vsub.f32 1.0, %v245
    %v257 = vmul.f32 %v255, %v256
    %v258 = vadd.f32 %v249, %v257
    %v259 = vlaneseq
    %v260 = vand.u32 %v259, 127
    %vm261 = vcmp.lt.s32.totalorder %v260, 64
    %v262 = vsel %vm261, %v258, 0.0
    %263 = vadd.xlane.f32.xlu0 %v262
    %v264 = vpop.xlane.xlu0 %263
    %v265 = vrot.slane %v264, 4
    %v266 = vadd.f32 %v264, %v265
    %v267 = vrot.slane %v266, 2
    %v268 = vadd.f32 %v266, %v267
    %v269 = vrot.slane %v268, 1
    %v270 = vadd.f32 %v268, %v269
    %s271 = vtos %v270
    %v272 = vstv %s271
    %v273 = vmul.f32 %v272, 0.020833334
    %v274 = vsel %vm261, 0.0, %v258
    %275 = vadd.xlane.f32.xlu0 %v274
    %v276 = vpop.xlane.xlu0 %275
    %v277 = vrot.slane %v276, 4
    %v278 = vadd.f32 %v276, %v277
    %v279 = vrot.slane %v278, 2
    %v280 = vadd.f32 %v278, %v279
    %v281 = vrot.slane %v280, 1
    %v282 = vadd.f32 %v280, %v281
    %s283 = vtos %v282
    %v284 = vstv %s283
    %v285 = vmul.f32 %v284, 0.020833334
    %v286 = vpack.c.bf16 %v254, %v254
    %v287 = vld [vmem:[%s5] sm:$0xff]
    %v288 = vld [vmem:[%s5 + $0x8] sm:$0xff]
    %v289 = vld [vmem:[%s5 + $0x10] sm:$0xff]
    %v290 = vld [vmem:[%s5 + $0x18] sm:$0xff]
    %v291 = vld [vmem:[%s5 + $0x20] sm:$0xff]
    %v292 = vld [vmem:[%s5 + $0x28] sm:$0xff]
    %v293 = vld [vmem:[%s5 + $0x30] sm:$0xff]
    %v294 = vld [vmem:[%s5 + $0x38] sm:$0xff]
    %v295 = vld [vmem:[%s5 + $0x40] sm:$0xff]
    %v296 = vld [vmem:[%s5 + $0x48] sm:$0xff]
    %v297 = vld [vmem:[%s5 + $0x50] sm:$0xff]
    %v298 = vld [vmem:[%s5 + $0x58] sm:$0xff]
    %v299 = vld [vmem:[%s5 + $0x60] sm:$0xff]
    %v300 = vld [vmem:[%s5 + $0x68] sm:$0xff]
    %v301 = vld [vmem:[%s5 + $0x70] sm:$0xff]
    %v302 = vld [vmem:[%s5 + $0x78] sm:$0xff]
    %v319 = vunpack.c.l.b16 %v287
    %v320 = vunpack.c.h.b16 %v287
    %v321 = vunpack.c.l.b16 %v288
    %v322 = vunpack.c.h.b16 %v288
    %v323 = vunpack.c.l.b16 %v289
    %v324 = vunpack.c.h.b16 %v289
    %v325 = vunpack.c.l.b16 %v290
    %v326 = vunpack.c.h.b16 %v290
    %v327 = vunpack.c.l.b16 %v291
    %v328 = vunpack.c.h.b16 %v291
    %v329 = vunpack.c.l.b16 %v292
    %v330 = vunpack.c.h.b16 %v292
    %v331 = vunpack.c.l.b16 %v293
    %v332 = vunpack.c.h.b16 %v293
    %v333 = vunpack.c.l.b16 %v294
    %v334 = vunpack.c.h.b16 %v294
    %v335 = vunpack.c.l.b16 %v295
    %v336 = vunpack.c.h.b16 %v295
    %v337 = vunpack.c.l.b16 %v296
    %v338 = vunpack.c.h.b16 %v296
    %v339 = vunpack.c.l.b16 %v297
    %v340 = vunpack.c.h.b16 %v297
    %v341 = vunpack.c.l.b16 %v298
    %v342 = vunpack.c.h.b16 %v298
    %v343 = vunpack.c.l.b16 %v299
    %v344 = vunpack.c.h.b16 %v299
    %v345 = vunpack.c.l.b16 %v300
    %v346 = vunpack.c.h.b16 %v300
    %v347 = vunpack.c.l.b16 %v301
    %v348 = vunpack.c.h.b16 %v301
    %v349 = vunpack.c.l.b16 %v302
    %v350 = vunpack.c.h.b16 %v302
    %v351 = vpack.c.b16 %v321, %v319
    %v352 = vpack.c.b16 %v322, %v320
    %v353 = vpack.c.b16 %v325, %v323
    %v354 = vpack.c.b16 %v326, %v324
    %v355 = vpack.c.b16 %v329, %v327
    %v356 = vpack.c.b16 %v330, %v328
    %v357 = vpack.c.b16 %v333, %v331
    %v358 = vpack.c.b16 %v334, %v332
    %v359 = vpack.c.b16 %v337, %v335
    %v360 = vpack.c.b16 %v338, %v336
    %v361 = vpack.c.b16 %v341, %v339
    %v362 = vpack.c.b16 %v342, %v340
    %v363 = vpack.c.b16 %v345, %v343
    %v364 = vpack.c.b16 %v346, %v344
    %v365 = vpack.c.b16 %v349, %v347
    %v366 = vpack.c.b16 %v350, %v348
    %383 = vmatprep.subr.bf16.mxu0 %v366
    %384 = vmatpush1.bf16.msra.mxu0 %v365
    %385 = vmatprep.subr.bf16.mxu0 %v364
    %386 = vmatpush1.bf16.msra.mxu0 %v363
    %387 = vmatprep.subr.bf16.mxu0 %v362
    %388 = vmatpush1.bf16.msra.mxu0 %v361
    %389 = vmatprep.subr.bf16.mxu0 %v360
    %390 = vmatpush1.bf16.msra.mxu0 %v359
    %391 = vmatprep.subr.bf16.mxu0 %v358
    %392 = vmatpush1.bf16.msra.mxu0 %v357
    %393 = vmatprep.subr.bf16.mxu0 %v356
    %394 = vmatpush1.bf16.msra.mxu0 %v355
    %395 = vmatprep.subr.bf16.mxu0 %v354
    %396 = vmatpush1.bf16.msra.mxu0 %v353
    %397 = vmatprep.subr.bf16.mxu0 %v352
    %398 = vmatpush1.bf16.msra.mxu0 %v351
    %399 = vmatprep.subr.bf16.mxu0 0
    %400 = vmatpush2.bf16.msra.mxu0 0
    %401 = vmatprep.subr.bf16.mxu0 0
    %402 = vmatpush2.bf16.msra.mxu0 0
    %403 = vmatprep.subr.bf16.mxu0 0
    %404 = vmatpush2.bf16.msra.mxu0 0
    %405 = vmatprep.subr.bf16.mxu0 0
    %406 = vmatpush2.bf16.msra.mxu0 0
    %407 = vmatprep.subr.bf16.mxu0 0
    %408 = vmatpush2.bf16.msra.mxu0 0
    %409 = vmatprep.subr.bf16.mxu0 0
    %410 = vmatpush2.bf16.msra.mxu0 0
    %411 = vmatprep.subr.bf16.mxu0 0
    %412 = vmatpush2.bf16.msra.mxu0 0
    %413 = vmatprep.subr.bf16.mxu0 0
    %414 = vmatpush2.bf16.msra.mxu0 0
    %415 = vmatprep.mubr.bf16.mxu0 0
    %416 = vmatmul.mubr.bf16.gmra.mxu0 %v286
    %v417 = vpop.f32.mrf.mxu0
    %v418 = vadd.f32 0.0, %v417
    %v419 = vpop.f32.mrf.mxu0
    %v420 = vadd.f32 0.0, %v419
    %v421 = vpop.f32.mrf.mxu0
    %v422 = vpop.f32.mrf.mxu0
    %423 = vdwg.mxu0
    %v424 = vadd.s32 %v260, 128
    %vm425 = vcmp.lt.s32.totalorder %v260, 128
    %vm426 = vcmp.lt.s32.totalorder %v424, 128
    %v427 = vsel %vm425, %v273, %v285
    %v428 = vsel %vm426, %v273, %v285
    %v429 = vsub.f32 %v44, %v418
    %v430 = vsub.f32 %v45, %v420
    %v431 = vmul.f32 %v427, %v42
    %v432 = vmul.f32 %v428, %v43
    %v433 = vadd.f32 %v429, %v431
    %v434 = vadd.f32 %v430, %v432
    %435 = vst [vmem:[%s6] sm:$0xff] %v433
    %436 = vst [vmem:[%s6 + $0x8] sm:$0xff] %v434
    %437 = vst [vmem:[%s7] sm:$0xff] %v254
    // Predicated region
    $region30: #{lamp_layer.1} parent=1 // pred_check
      _
    $region31: #{lamp_layer.1} parent=1 // pred_check_branch
      %439 = sbr.rel (0) target = $region33
    $region32: #{lamp_layer.1} parent=1 // pred_region
      _
    $region33: #{lamp_layer.1} parent=1 // pred_fallthru
      _
    // Predicated region
    $region34: #{lamp_layer.1} parent=1 // pred_check
      _
    $region35: #{lamp_layer.1} parent=1 // pred_check_branch
      %441 = sbr.rel (0) target = $region37
    $region36: #{lamp_layer.1} parent=1 // pred_region
      _
    $region37: #{lamp_layer.1} parent=1 // pred_fallthru
      _
    // Predicated region
    $region38: #{lamp_layer.1} parent=1 // pred_check
      _
    $region39: #{lamp_layer.1} parent=1 // pred_check_branch
      %443 = sbr.rel (0) target = $region41
    $region40: #{lamp_layer.1} parent=1 // pred_region
      _
    $region41: #{lamp_layer.1} parent=1 // pred_fallthru
      _
    // Predicated region
    $region42: #{lamp_layer.1} parent=1 // pred_check
      _
    $region43: #{lamp_layer.1} parent=1 // pred_check_branch
      %445 = sbr.rel (0) target = $region45
    $region44: #{lamp_layer.1} parent=1 // pred_region
      _
    $region45: #{lamp_layer.1} parent=1 // pred_fallthru
      _
    %446 = vsyncpa [#allocation3], 1

</llo_original>
